<compile_context>
chip_gen: v7x
topology: tpu7x:2x2x1
jax: 0.10.0
libtpu: 0.0.40
codegen_flags: <defaults>
</compile_context>

<pallas_src>
import jax
import jax.numpy as jnp
from jax.experimental import pallas as pl
from jax.experimental.pallas import tpu as pltpu

_LANE = 128
_SUBLANE = 8
_MAX_BATCH_TILE = 16384            # upper bound on rows per batch tile
_VMEM_TILE_BUDGET = 6 * 1024 * 1024  # per-copy (x tile + out tile) budget; x2 for
                                     # double-buffering stays under v5e's 16 MiB
                                     # scoped-VMEM default on every generation.
_PAD_OUT_THRESHOLD = 256           # only lane-pad the output dim when it's large


def _round_up(x, m):
    return -(-x // m) * m


def _choose_batch_tile(B, in_dim, out_dim_p, itemsize):
    """Pick the batch-tile size: as big as the VMEM budget allows, multiple of 8,
    and split into >=2 programs (for v7x's two TensorCores) when there's enough
    work to go around."""
    bytes_per_row = max((in_dim + out_dim_p) * itemsize, 1)
    cap = (_VMEM_TILE_BUDGET // bytes_per_row) // _SUBLANE * _SUBLANE
    cap = max(_SUBLANE, min(cap, _MAX_BATCH_TILE))
    if B <= cap:
        if B >= 2048:
            # Enough rows that a second program is worthwhile (v7x megacore).
            return _round_up(pl.cdiv(B, 2), _SUBLANE)
        return B  # single program; block == full array (no (8,128) concern)
    return cap


def _generator_kernel(x_ref, w1_ref, b1_ref, w2_ref, b2_ref, gen_out_ref):
    x = x_ref[...]

    # hidden = leaky_relu(x @ W1 + b1), f32 MXU accumulation, f32 elementwise
    h = jnp.dot(x, w1_ref[...], preferred_element_type=jnp.float32)
    h = h + b1_ref[...].astype(jnp.float32)
    h = jnp.where(h > 0, h, 0.01 * h)          # F.leaky_relu default slope 0.01

    # output = tanh(h @ W2 + b2); narrow only at the final store.
    o = jnp.dot(h.astype(w2_ref.dtype), w2_ref[...],
                preferred_element_type=jnp.float32)
    o = o + b2_ref[...].astype(jnp.float32)
    gen_out_ref[...] = jnp.tanh(o).astype(gen_out_ref.dtype)


def generator_forward(x, w1, b1, w2, b2, *, compute_gen_output=True):
    """Generator forward pass.

    Returns (x, gen_out):
      * `x`       — the PyTorch module's actual return value (input, unchanged;
                    no kernel passthrough, zero extra HBM traffic).
      * `gen_out` — tanh(leaky_relu(x @ W1 + b1) @ W2 + b2), the value the module
                    computes but discards. None if compute_gen_output=False
                    (cheapest option for callers who only need the module's
                    return value).
    """
    if not compute_gen_output:
        return x, None

    B, in_dim = x.shape
    hid = w1.shape[1]
    out_dim = w2.shape[1]

    # Lane-dense (128-padded) output only pays off for wide outputs; for small
    # out_dim it multiplies HBM writeback (8x at out_dim=16), so skip it.
    if out_dim >= _PAD_OUT_THRESHOLD and out_dim % _LANE != 0:
        pad = _LANE - out_dim % _LANE
        w2p = jnp.pad(w2, ((0, 0), (0, pad)))
        b2p = jnp.pad(b2, ((0, 0), (0, pad)))
        out_dim_p = out_dim + pad
    else:
        w2p, b2p = w2, b2
        out_dim_p = out_dim

    itemsize = jnp.dtype(x.dtype).itemsize
    tb = _choose_batch_tile(B, in_dim, out_dim_p, itemsize)
    grid = (pl.cdiv(B, tb),)   # ragged last block handled by Pallas write masking

    flops = 2 * B * (in_dim * hid + hid * out_dim_p)
    bytes_accessed = (
        itemsize * B * (in_dim + out_dim_p)
        + jnp.dtype(w1.dtype).itemsize * (w1.size + b1.size)
        + jnp.dtype(w2p.dtype).itemsize * (w2p.size + b2p.size)
    )

    gen_out_p = pl.pallas_call(
        _generator_kernel,
        out_shape=jax.ShapeDtypeStruct((B, out_dim_p), x.dtype),
        grid=grid,
        in_specs=[
            pl.BlockSpec((tb, in_dim), lambda i: (i, 0)),       # x: tiled over batch
            pl.BlockSpec((in_dim, hid), lambda i: (0, 0)),      # W1: VMEM-resident
            pl.BlockSpec((1, hid), lambda i: (0, 0)),           # b1: VMEM-resident
            pl.BlockSpec((hid, out_dim_p), lambda i: (0, 0)),   # W2: VMEM-resident
            pl.BlockSpec((1, out_dim_p), lambda i: (0, 0)),     # b2: VMEM-resident
        ],
        out_specs=pl.BlockSpec((tb, out_dim_p), lambda i: (i, 0)),
        compiler_params=pltpu.CompilerParams(
            dimension_semantics=("parallel",)),
        cost_estimate=pl.CostEstimate(
            flops=flops,
            transcendentals=B * out_dim_p,
            bytes_accessed=bytes_accessed),
    )(x, w1, b1, w2p, b2p)

    gen_out = gen_out_p if out_dim_p == out_dim else gen_out_p[:, :out_dim]
    return x, gen_out


def init_params(key, input_size, hidden_dim, output_size, dtype=jnp.float32):
    """Deterministic init matching nn.Linear shapes (stored as [in, out])."""
    k1, k2, k3, k4 = jax.random.split(key, 4)
    lim1 = 1.0 / jnp.sqrt(input_size)
    lim2 = 1.0 / jnp.sqrt(hidden_dim)
    w1 = jax.random.uniform(k1, (input_size, hidden_dim), dtype, -lim1, lim1)
    b1 = jax.random.uniform(k2, (1, hidden_dim), dtype, -lim1, lim1)
    w2 = jax.random.uniform(k3, (hidden_dim, output_size), dtype, -lim2, lim2)
    b2 = jax.random.uniform(k4, (1, output_size), dtype, -lim2, lim2)
    return w1, b1, w2, b2


def _ref_forward(x, w1, b1, w2, b2):
    h = x.astype(jnp.float32) @ w1.astype(jnp.float32) + b1.astype(jnp.float32)
    h = jnp.where(h > 0, h, 0.01 * h)
    return jnp.tanh(h @ w2.astype(jnp.float32) + b2.astype(jnp.float32))


if __name__ == "__main__":
    # Small shapes consistent with the module: Linear(input_size, hidden_dim),
    # Linear(hidden_dim, output_size).
    B, input_size, hidden_dim, output_size = 8, 16, 32, 16

    key = jax.random.PRNGKey(0)
    kx, kp, kx2 = jax.random.split(key, 3)
    x = jax.random.normal(kx, (B, input_size), jnp.float32)
    w1, b1, w2, b2 = init_params(kp, input_size, hidden_dim, output_size)

    x_ret, gen_out = generator_forward(x, w1, b1, w2, b2)
    jax.block_until_ready((x_ret, gen_out))

    gen_ref = _ref_forward(x, w1, b1, w2, b2)
    assert x_ret.shape == x.shape
    assert jnp.allclose(x_ret, x, atol=1e-6), "passthrough mismatch"
    assert gen_out.shape == (B, output_size)
    assert jnp.allclose(gen_out, gen_ref, atol=1e-5), "generator output mismatch"

    # Exercise the multi-program + ragged-last-block path (B not a multiple of
    # the batch tile, grid split into 2 programs).
    B2 = 2500
    x2 = jax.random.normal(kx2, (B2, input_size), jnp.float32)
    x2_ret, gen_out2 = generator_forward(x2, w1, b1, w2, b2)
    jax.block_until_ready((x2_ret, gen_out2))
    gen_ref2 = _ref_forward(x2, w1, b1, w2, b2)
    assert gen_out2.shape == (B2, output_size)
    assert jnp.allclose(gen_out2, gen_ref2, atol=1e-5), "ragged-block mismatch"

    # Module's actual return value (x) is also correct when skipping dead work.
    x_only, none_out = generator_forward(x, w1, b1, w2, b2, compute_gen_output=False)
    assert none_out is None and jnp.allclose(x_only, x)

    print("KERNEL_OK")
</pallas_src>

<mosaic_0001>
module attributes {stable_mosaic.version = 11 : i64} {
  func.func @_generator_kernel(%arg0: i32, %arg1: memref<8x16xf32, #tpu.memory_space<vmem>>, %arg2: memref<16x32xf32, #tpu.memory_space<vmem>>, %arg3: memref<1x32xf32, #tpu.memory_space<vmem>>, %arg4: memref<32x16xf32, #tpu.memory_space<vmem>>, %arg5: memref<1x16xf32, #tpu.memory_space<vmem>>, %arg6: memref<8x16xf32, #tpu.memory_space<vmem>>) attributes {dimension_semantics = [#tpu.dimension_semantics<parallel>], iteration_bounds = array<i64: 1>, scalar_prefetch = 0 : i64, scratch_operands = 0 : i64, tpu.core_type = #tpu.core_type<tc>, window_params = [{transform_indices = @transform_0, window_bounds = array<i64: 8, 16>}, {pipeline_mode = #tpu.pipeline_mode<synchronous>, transform_indices = @transform_1, window_bounds = array<i64: 16, 32>}, {pipeline_mode = #tpu.pipeline_mode<synchronous>, transform_indices = @transform_2, window_bounds = array<i64: 1, 32>}, {pipeline_mode = #tpu.pipeline_mode<synchronous>, transform_indices = @transform_3, window_bounds = array<i64: 32, 16>}, {pipeline_mode = #tpu.pipeline_mode<synchronous>, transform_indices = @transform_4, window_bounds = array<i64: 1, 16>}, {transform_indices = @transform_5, window_bounds = array<i64: 8, 16>}]} {
    %c0 = arith.constant 0 : index
    %c0_0 = arith.constant 0 : index
    %0 = vector.load %arg1[%c0, %c0_0] : memref<8x16xf32, #tpu.memory_space<vmem>>, vector<8x16xf32>
    %c0_1 = arith.constant 0 : index
    %c0_2 = arith.constant 0 : index
    %1 = vector.load %arg2[%c0_1, %c0_2] : memref<16x32xf32, #tpu.memory_space<vmem>>, vector<16x32xf32>
    %cst = arith.constant dense<0.000000e+00> : vector<8x32xf32>
    %2 = tpu.matmul %0, %1, %cst {dimension_numbers = #tpu.dot_dimension_numbers<[1], [0], [0], [1], [0, 0, 1, 1], [], []>} : vector<8x16xf32>, vector<16x32xf32>, vector<8x32xf32> -> vector<8x32xf32>
    %c0_3 = arith.constant 0 : index
    %c0_4 = arith.constant 0 : index
    %3 = vector.load %arg3[%c0_3, %c0_4] : memref<1x32xf32, #tpu.memory_space<vmem>>, vector<1x32xf32>
    %4 = vector.broadcast %3 : vector<1x32xf32> to vector<8x32xf32>
    %5 = arith.addf %2, %4 : vector<8x32xf32>
    %cst_5 = arith.constant 0.000000e+00 : f32
    %6 = vector.broadcast %cst_5 : f32 to vector<8x32xf32>
    %7 = arith.cmpf ogt, %5, %6 : vector<8x32xf32>
    %cst_6 = arith.constant 0.00999999977 : f32
    %8 = vector.broadcast %cst_6 : f32 to vector<8x32xf32>
    %9 = arith.mulf %8, %5 : vector<8x32xf32>
    %10 = arith.select %7, %5, %9 : vector<8x32xi1>, vector<8x32xf32>
    %c0_7 = arith.constant 0 : index
    %c0_8 = arith.constant 0 : index
    %11 = vector.load %arg4[%c0_7, %c0_8] : memref<32x16xf32, #tpu.memory_space<vmem>>, vector<32x16xf32>
    %cst_9 = arith.constant dense<0.000000e+00> : vector<8x16xf32>
    %12 = tpu.matmul %10, %11, %cst_9 {dimension_numbers = #tpu.dot_dimension_numbers<[1], [0], [0], [1], [0, 0, 1, 1], [], []>} : vector<8x32xf32>, vector<32x16xf32>, vector<8x16xf32> -> vector<8x16xf32>
    %c0_10 = arith.constant 0 : index
    %c0_11 = arith.constant 0 : index
    %13 = vector.load %arg5[%c0_10, %c0_11] : memref<1x16xf32, #tpu.memory_space<vmem>>, vector<1x16xf32>
    %14 = vector.broadcast %13 : vector<1x16xf32> to vector<8x16xf32>
    %15 = arith.addf %12, %14 : vector<8x16xf32>
    %16 = math.tanh %15 : vector<8x16xf32>
    %c0_12 = arith.constant 0 : index
    %c0_13 = arith.constant 0 : index
    %17 = vector.load %arg6[%c0_12, %c0_13] : memref<8x16xf32, #tpu.memory_space<vmem>>, vector<8x16xf32>
    tpu.vector_store %arg6[%c0_12, %c0_13], %16 {strides = array<i32>} : memref<8x16xf32, #tpu.memory_space<vmem>>, vector<8x16xf32>,
    return
  }
  func.func @transform_0(%arg0: i32) -> (i32, i32) {
    %c0_i32 = arith.constant 0 : i32
    %c0_i32_0 = arith.constant 0 : i32
    return %arg0, %c0_i32 : i32, i32
  }
  func.func @transform_1(%arg0: i32) -> (i32, i32) {
    %c0_i32 = arith.constant 0 : i32
    %c0_i32_0 = arith.constant 0 : i32
    %c0_i32_1 = arith.constant 0 : i32
    return %c0_i32, %c0_i32_0 : i32, i32
  }
  func.func @transform_2(%arg0: i32) -> (i32, i32) {
    %c0_i32 = arith.constant 0 : i32
    %c0_i32_0 = arith.constant 0 : i32
    %c0_i32_1 = arith.constant 0 : i32
    return %c0_i32, %c0_i32_0 : i32, i32
  }
  func.func @transform_3(%arg0: i32) -> (i32, i32) {
    %c0_i32 = arith.constant 0 : i32
    %c0_i32_0 = arith.constant 0 : i32
    %c0_i32_1 = arith.constant 0 : i32
    return %c0_i32, %c0_i32_0 : i32, i32
  }
  func.func @transform_4(%arg0: i32) -> (i32, i32) {
    %c0_i32 = arith.constant 0 : i32
    %c0_i32_0 = arith.constant 0 : i32
    %c0_i32_1 = arith.constant 0 : i32
    return %c0_i32, %c0_i32_0 : i32, i32
  }
  func.func @transform_5(%arg0: i32) -> (i32, i32) {
    %c0_i32 = arith.constant 0 : i32
    %c0_i32_0 = arith.constant 0 : i32
    return %arg0, %c0_i32 : i32, i32
  }
}

</mosaic_0001>

<llo_original>
// kernel: tpu_custom_call.1
$region0: #{tpu_custom_call.1}
  #allocation0 [shape = 'u32[]', space=smem, size = 0x4, offset = 0x4, fixed_abs, tag = 'smem constant byte address 0x4 - core index']
  #allocation1 [shape = 'u32[144,128]{1,0:T(1,128)}', space=vmem, size = 0x12000, scoped, tag = 'internal scratch']
  %s0 = inlined_call_operand.vmem [shape: f32[8,16], index: 0, kind: input, shape index: {}]
  %s1 = inlined_call_operand.vmem [shape: f32[16,32], index: 1, kind: input, shape index: {}]
  %s2 = inlined_call_operand.vmem [shape: f32[1,32], index: 2, kind: input, shape index: {}]
  %s3 = inlined_call_operand.vmem [shape: f32[32,16], index: 3, kind: input, shape index: {}]
  %s4 = inlined_call_operand.vmem [shape: f32[1,16], index: 4, kind: input, shape index: {}]
  %s5 = inlined_call_operand.hbm [shape: f32[8,16], index: 5, kind: output, shape index: {}]
  %s6 = sld [smem:[#allocation0]]
  $region30: #{tpu_custom_call.1} parent=0
    _
  %s8 = ssub.s32 1, %s6
  %s9 = scalar_select 0, %s8, %s6
  $region1: #{tpu_custom_call.1} parent=0
    #allocation2 [shape = 'u8[4096]{0}', space=vmem, size = 0x1000, scoped, tag = 'output window, operand 0, single buffered']
    #allocation3 [shape = 's32[1]{0}', space=sflag, size = 0x4, scoped, tag = 'scoped memory for tpu_custom_call.1']
    %10 = vsyncpa [#allocation3], 0
    // Predicated region
    $region2: #{tpu_custom_call.1} parent=1 // pred_check
      _
    $region3: #{tpu_custom_call.1} parent=1 // pred_check_branch
      %12 = sbr.rel (0) target = $region5
    $region4: #{tpu_custom_call.1} parent=1 // pred_region
      _
    $region5: #{tpu_custom_call.1} parent=1 // pred_fallthru
      _
    // Predicated region
    $region6: #{tpu_custom_call.1} parent=1 // pred_check
      _
    $region7: #{tpu_custom_call.1} parent=1 // pred_check_branch
      %14 = sbr.rel (0) target = $region9
    $region8: #{tpu_custom_call.1} parent=1 // pred_region
      _
    $region9: #{tpu_custom_call.1} parent=1 // pred_fallthru
      _
    // Predicated region
    $region10: #{tpu_custom_call.1} parent=1 // pred_check
      _
    $region11: #{tpu_custom_call.1} parent=1 // pred_check_branch
      %16 = sbr.rel (0) target = $region13
    $region12: #{tpu_custom_call.1} parent=1 // pred_region
      _
    $region13: #{tpu_custom_call.1} parent=1 // pred_fallthru
      _
    // Predicated region
    $region14: #{tpu_custom_call.1} parent=1 // pred_check
      _
    $region15: #{tpu_custom_call.1} parent=1 // pred_check_branch
      %18 = sbr.rel (0) target = $region17
    $region16: #{tpu_custom_call.1} parent=1 // pred_region
      _
    $region17: #{tpu_custom_call.1} parent=1 // pred_fallthru
      _
    // Predicated region
    $region18: #{tpu_custom_call.1} parent=1 // pred_check
      _
    $region19: #{tpu_custom_call.1} parent=1 // pred_check_branch
      %20 = sbr.rel (0) target = $region21
    $region20: #{tpu_custom_call.1} parent=1 // pred_region
      _
    $region21: #{tpu_custom_call.1} parent=1 // pred_fallthru
      _
    %v21 = vld [vmem:[%s0] sm:$0xff]
    %v22 = vld [vmem:[%s1] sm:$0xff]
    %v23 = vld [vmem:[%s1 + $0x8] sm:$0xff]
    %v24 = vld [vmem:[%s2] sm:$0x1]
    %v26 = vlaneseq
    %v27 = vshrl.u32 %v26, 7
    %v28 = vsub.s32 0, %v27
    %v29 = vrot.slane %v24, %v28
    %vm31 = vcmask 130048
    %v33 = vsel %vm31, %v21, 0
    %35 = vmatprep.subr.mxu0 0.0
    %36 = vmatpush1.msra.mxu0 %v22
    %37 = vmatprep.subr.mxu0 0.0
    %38 = vmatpush1.msra.mxu0 %v23
    %39 = vmatprep.subr.mxu0 0.0
    %40 = vmatpush1.msra.mxu0 0.0
    %41 = vmatprep.subr.mxu0 0.0
    %42 = vmatpush1.msra.mxu0 0.0
    %43 = vmatprep.subr.mxu0 0.0
    %44 = vmatpush1.msra.mxu0 0.0
    %45 = vmatprep.subr.mxu0 0.0
    %46 = vmatpush1.msra.mxu0 0.0
    %47 = vmatprep.subr.mxu0 0.0
    %48 = vmatpush1.msra.mxu0 0.0
    %49 = vmatprep.subr.mxu0 0.0
    %50 = vmatpush1.msra.mxu0 0.0
    %51 = vmatprep.subr.mxu0 0.0
    %52 = vmatpush1.msra.mxu0 0.0
    %53 = vmatprep.subr.mxu0 0.0
    %54 = vmatpush1.msra.mxu0 0.0
    %55 = vmatprep.subr.mxu0 0.0
    %56 = vmatpush1.msra.mxu0 0.0
    %57 = vmatprep.subr.mxu0 0.0
    %58 = vmatpush1.msra.mxu0 0.0
    %59 = vmatprep.subr.mxu0 0.0
    %60 = vmatpush1.msra.mxu0 0.0
    %61 = vmatprep.subr.mxu0 0.0
    %62 = vmatpush1.msra.mxu0 0.0
    %63 = vmatprep.subr.mxu0 0.0
    %64 = vmatpush1.msra.mxu0 0.0
    %65 = vmatprep.subr.mxu0 0.0
    %66 = vmatpush1.msra.mxu0 0.0
    %67 = vmatprep.subr.mxu0 0.0
    %68 = vmatpush1.msra.mxu0 0.0
    %69 = vmatprep.subr.mxu0 0.0
    %70 = vmatpush1.msra.mxu0 0.0
    %71 = vmatprep.subr.mxu0 0.0
    %72 = vmatpush1.msra.mxu0 0.0
    %73 = vmatprep.subr.mxu0 0.0
    %74 = vmatpush1.msra.mxu0 0.0
    %75 = vmatprep.subr.mxu0 0.0
    %76 = vmatpush1.msra.mxu0 0.0
    %77 = vmatprep.subr.mxu0 0.0
    %78 = vmatpush1.msra.mxu0 0.0
    %79 = vmatprep.subr.mxu0 0.0
    %80 = vmatpush1.msra.mxu0 0.0
    %81 = vmatprep.subr.mxu0 0.0
    %82 = vmatpush1.msra.mxu0 0.0
    %83 = vmatprep.subr.mxu0 0.0
    %84 = vmatpush1.msra.mxu0 0.0
    %85 = vmatprep.subr.mxu0 0.0
    %86 = vmatpush1.msra.mxu0 0.0
    %87 = vmatprep.subr.mxu0 0.0
    %88 = vmatpush1.msra.mxu0 0.0
    %89 = vmatprep.subr.mxu0 0.0
    %90 = vmatpush1.msra.mxu0 0.0
    %91 = vmatprep.subr.mxu0 0.0
    %92 = vmatpush1.msra.mxu0 0.0
    %93 = vmatprep.subr.mxu0 0.0
    %94 = vmatpush1.msra.mxu0 0.0
    %95 = vmatprep.subr.mxu0 0.0
    %96 = vmatpush1.msra.mxu0 0.0
    %97 = vmatprep.subr.mxu0 0.0
    %98 = vmatpush1.msra.mxu0 0.0
    %99 = vmatprep.mubr.f32.mxu0 0.0
    %100 = vmatmul.mubr.f32.gmra.mrb[0].mxu0 %v33
    %v101 = vpop.f32.mrb[0].mxu0
    %v102 = vadd.f32 %v29, %v101
    %v103 = vpop.f32.mrb[0].mxu0
    %104 = vdwg.mxu0
    %vm105 = vcmp.gt.f32.partialorder %v102, 0.0
    %v106 = vmul.f32 %v102, 0.01
    %v107 = vsel %vm105, %v102, %v106
    %v108 = vld [vmem:[%s3] sm:$0xff]
    %v109 = vld [vmem:[%s3 + $0x8] sm:$0xff]
    %v110 = vld [vmem:[%s3 + $0x10] sm:$0xff]
    %v111 = vld [vmem:[%s3 + $0x18] sm:$0xff]
    %v112 = vld [vmem:[%s4] sm:$0x1]
    %v114 = vlaneseq
    %v115 = vshrl.u32 %v114, 7
    %v116 = vsub.s32 0, %v115
    %v117 = vrot.slane %v112, %v116
    %vm119 = vcmask 261120
    %v121 = vsel %vm119, %v107, 0
    %123 = vmatprep.subr.mxu0 0.0
    %124 = vmatpush1.msra.mxu0 %v108
    %125 = vmatprep.subr.mxu0 0.0
    %126 = vmatpush1.msra.mxu0 %v109
    %127 = vmatprep.subr.mxu0 0.0
    %128 = vmatpush1.msra.mxu0 %v110
    %129 = vmatprep.subr.mxu0 0.0
    %130 = vmatpush1.msra.mxu0 %v111
    %131 = vmatprep.subr.mxu0 0.0
    %132 = vmatpush1.msra.mxu0 0.0
    %133 = vmatprep.subr.mxu0 0.0
    %134 = vmatpush1.msra.mxu0 0.0
    %135 = vmatprep.subr.mxu0 0.0
    %136 = vmatpush1.msra.mxu0 0.0
    %137 = vmatprep.subr.mxu0 0.0
    %138 = vmatpush1.msra.mxu0 0.0
    %139 = vmatprep.subr.mxu0 0.0
    %140 = vmatpush1.msra.mxu0 0.0
    %141 = vmatprep.subr.mxu0 0.0
    %142 = vmatpush1.msra.mxu0 0.0
    %143 = vmatprep.subr.mxu0 0.0
    %144 = vmatpush1.msra.mxu0 0.0
    %145 = vmatprep.subr.mxu0 0.0
    %146 = vmatpush1.msra.mxu0 0.0
    %147 = vmatprep.subr.mxu0 0.0
    %148 = vmatpush1.msra.mxu0 0.0
    %149 = vmatprep.subr.mxu0 0.0
    %150 = vmatpush1.msra.mxu0 0.0
    %151 = vmatprep.subr.mxu0 0.0
    %152 = vmatpush1.msra.mxu0 0.0
    %153 = vmatprep.subr.mxu0 0.0
    %154 = vmatpush1.msra.mxu0 0.0
    %155 = vmatprep.subr.mxu0 0.0
    %156 = vmatpush1.msra.mxu0 0.0
    %157 = vmatprep.subr.mxu0 0.0
    %158 = vmatpush1.msra.mxu0 0.0
    %159 = vmatprep.subr.mxu0 0.0
    %160 = vmatpush1.msra.mxu0 0.0
    %161 = vmatprep.subr.mxu0 0.0
    %162 = vmatpush1.msra.mxu0 0.0
    %163 = vmatprep.subr.mxu0 0.0
    %164 = vmatpush1.msra.mxu0 0.0
    %165 = vmatprep.subr.mxu0 0.0
    %166 = vmatpush1.msra.mxu0 0.0
    %167 = vmatprep.subr.mxu0 0.0
    %168 = vmatpush1.msra.mxu0 0.0
    %169 = vmatprep.subr.mxu0 0.0
    %170 = vmatpush1.msra.mxu0 0.0
    %171 = vmatprep.subr.mxu0 0.0
    %172 = vmatpush1.msra.mxu0 0.0
    %173 = vmatprep.subr.mxu0 0.0
    %174 = vmatpush1.msra.mxu0 0.0
    %175 = vmatprep.subr.mxu0 0.0
    %176 = vmatpush1.msra.mxu0 0.0
    %177 = vmatprep.subr.mxu0 0.0
    %178 = vmatpush1.msra.mxu0 0.0
    %179 = vmatprep.subr.mxu0 0.0
    %180 = vmatpush1.msra.mxu0 0.0
    %181 = vmatprep.subr.mxu0 0.0
    %182 = vmatpush1.msra.mxu0 0.0
    %183 = vmatprep.subr.mxu0 0.0
    %184 = vmatpush1.msra.mxu0 0.0
    %185 = vmatprep.subr.mxu0 0.0
    %186 = vmatpush1.msra.mxu0 0.0
    %187 = vmatprep.mubr.f32.mxu0 0.0
    %188 = vmatmul.mubr.f32.gmra.mrb[0].mxu0 %v121
    %v189 = vpop.f32.mrb[0].mxu0
    %v190 = vadd.f32 %v117, %v189
    %v191 = vpop.f32.mrb[0].mxu0
    %192 = vdwg.mxu0
    %v193 = vtanh.pop %v190
    %194 = vst.msk [vmem:[#allocation2] sm:$0xff] %vm31, %v193
    // Predicated region
    $region22: #{tpu_custom_call.1} parent=1 // pred_check
      _
    $region23: #{tpu_custom_call.1} parent=1 // pred_check_branch
      %196 = sbr.rel (0) target = $region25
    $region24: #{tpu_custom_call.1} parent=1 // pred_region
      %s198 = ssub.s32 128, 128
      %199 = vsyncadd [#allocation3], %s198
      %s201 = sshll.u32 [#allocation2], 4
      %s202 = int_to_ptr.vmem [resolvable:$true] %s201
      %204 = dma.vmem_to_hbm [thread:$0]  %s202, 128, %s5, [#allocation3]
    $region25: #{tpu_custom_call.1} parent=1 // pred_fallthru
      _
    // Predicated region
    $region26: #{tpu_custom_call.1} parent=1 // pred_check
      _
    $region27: #{tpu_custom_call.1} parent=1 // pred_check_branch
      %206 = sbr.rel (0) target = $region29
    $region28: #{tpu_custom_call.1} parent=1 // pred_region
      %207 = dma.done [#allocation3], 128
    $region29: #{tpu_custom_call.1} parent=1 // pred_fallthru
      _
    %208 = vsyncpa [#allocation3], 1

</llo_original>
